<compile_context>
chip_gen: v7x
topology: tpu7x:2x2x1
jax: 0.10.0
libtpu: 0.0.40
codegen_flags: <defaults>
</compile_context>

<pallas_src>
import jax
import jax.numpy as jnp
from jax import lax
from jax.experimental import pallas as pl
from jax.experimental.pallas import tpu as pltpu

EPS = 1e-5  # torch.nn.LayerNorm default eps


def _vmem_limit_bytes():
    """Generation-aware VMEM budget: ~3/4 of physical, capped at 112 MiB."""
    cap = 64 * 1024 * 1024
    try:
        info = pltpu.get_tpu_info()
        cap = int(getattr(info, "vmem_capacity_bytes", cap))
    except Exception:
        pass
    return min(int(cap * 3 // 4), 112 * 1024 * 1024)


VMEM_LIMIT = _vmem_limit_bytes()


def _round_up(v, m):
    return ((v + m - 1) // m) * m


def _row_tile(rows, cap=512):
    for t in (512, 256, 128, 64, 32, 16, 8):
        if t <= cap and rows % t == 0:
            return t
    return rows  # full extent is always a legal block shape


def _edge_tile(num_edges):
    # (1, te) lane-layout index tiles require te % 128 == 0 or te == num_edges.
    for t in (512, 256, 128):
        if num_edges % t == 0:
            return t
    return num_edges


def _layer_norm(y, gamma, beta):
    mean = jnp.mean(y, axis=-1, keepdims=True)
    var = jnp.mean(jnp.square(y - mean), axis=-1, keepdims=True)
    return (y - mean) * lax.rsqrt(var + EPS) * gamma + beta


# ----------------------------------------------------------------------------
# MLP kernels (encoders / decoder)
# ----------------------------------------------------------------------------
def _mlp_ln_kernel(x_ref, w1_ref, b1_ref, w2_ref, b2_ref, g_ref, bt_ref, o_ref):
    x = x_ref[...].astype(jnp.bfloat16)
    h = jnp.maximum(
        jnp.dot(x, w1_ref[...], preferred_element_type=jnp.float32) + b1_ref[...], 0.0)
    y = jnp.dot(h.astype(jnp.bfloat16), w2_ref[...],
                preferred_element_type=jnp.float32) + b2_ref[...]
    o_ref[...] = _layer_norm(y, g_ref[...], bt_ref[...])


def _mlp_kernel(x_ref, w1_ref, b1_ref, w2_ref, b2_ref, o_ref):
    x = x_ref[...].astype(jnp.bfloat16)
    h = jnp.maximum(
        jnp.dot(x, w1_ref[...], preferred_element_type=jnp.float32) + b1_ref[...], 0.0)
    o_ref[...] = jnp.dot(h.astype(jnp.bfloat16), w2_ref[...],
                         preferred_element_type=jnp.float32) + b2_ref[...]


def mlp_pallas(x, params, layer_norm=True, out_features=None):
    rows, din = x.shape
    if layer_norm:
        w1, b1, w2, b2, g, bt = params
    else:
        w1, b1, w2, b2 = params
    dh = w1.shape[1]
    dout = w2.shape[1]
    tr = _row_tile(rows, cap=512)

    full = lambda shape: pl.BlockSpec(shape, lambda i: (0, 0))
    in_specs = [pl.BlockSpec((tr, din), lambda i: (i, 0)),
                full((din, dh)), full((1, dh)),
                full((dh, dout)), full((1, dout))]
    args = [x, w1, b1, w2, b2]
    kernel = _mlp_kernel
    if layer_norm:
        in_specs += [full((1, dout)), full((1, dout))]
        args += [g, bt]
        kernel = _mlp_ln_kernel

    out = pl.pallas_call(
        kernel,
        grid=(rows // tr,),
        in_specs=in_specs,
        out_specs=pl.BlockSpec((tr, dout), lambda i: (i, 0)),
        out_shape=jax.ShapeDtypeStruct((rows, dout), jnp.float32),
        compiler_params=pltpu.CompilerParams(
            dimension_semantics=("parallel",), vmem_limit_bytes=VMEM_LIMIT),
    )(*args)
    if out_features is not None and out_features != dout:
        out = out[:, :out_features]  # crop lane-dense padded decoder output
    return out


# ----------------------------------------------------------------------------
# Fused GraphNetBlock: edge MLP + one-hot MXU gather/scatter + node MLP
# ----------------------------------------------------------------------------
def _block_kernel(send_ref, recv_s_ref, recv_l_ref,            # index tiles
                  node_ref, edge_ref,                          # features
                  ws_ref, wr_ref, we_ref, be1_ref, we2_ref, be2_ref, ge_ref, bte_ref,
                  wx_ref, wa_ref, bn1_ref, wn2_ref, bn2_ref, gn_ref, btn_ref,
                  edge_out_ref, node_out_ref,
                  agg_ref):                                    # (N, De) f32 scratch
    step = pl.program_id(0)
    te = edge_ref.shape[0]
    n_nodes = node_ref.shape[0]

    @pl.when(step == 0)
    def _():
        agg_ref[...] = jnp.zeros_like(agg_ref)
        node_out_ref[...] = jnp.zeros_like(node_out_ref)

    node_bf16 = node_ref[...].astype(jnp.bfloat16)             # (N, Dn)

    # --- vectorized gather: one-hot selection matrices on the MXU -----------
    iota_n = lax.broadcasted_iota(jnp.int32, (te, n_nodes), 1)
    p_send = jnp.where(iota_n == send_ref[...], 1.0, 0.0).astype(jnp.bfloat16)
    p_recv = jnp.where(iota_n == recv_s_ref[...], 1.0, 0.0).astype(jnp.bfloat16)
    g_send = jnp.dot(p_send, node_bf16, preferred_element_type=jnp.bfloat16)
    g_recv = jnp.dot(p_recv, node_bf16, preferred_element_type=jnp.bfloat16)

    # --- edge MLP: split-K matmuls == concat([send, recv, edge], -1) @ W1 ---
    x_e = edge_ref[...]
    h = (jnp.dot(g_send, ws_ref[...], preferred_element_type=jnp.float32)
         + jnp.dot(g_recv, wr_ref[...], preferred_element_type=jnp.float32)
         + jnp.dot(x_e.astype(jnp.bfloat16), we_ref[...],
                   preferred_element_type=jnp.float32)
         + be1_ref[...])
    h = jnp.maximum(h, 0.0)
    y = jnp.dot(h.astype(jnp.bfloat16), we2_ref[...],
                preferred_element_type=jnp.float32) + be2_ref[...]
    upd_e = _layer_norm(y, ge_ref[...], bte_ref[...])          # (te, De) f32

    edge_out_ref[...] = x_e + upd_e                            # residual edges

    # --- vectorized scatter-add: transposed one-hot @ updates on the MXU ----
    p_recv_t = jnp.where(
        lax.broadcasted_iota(jnp.int32, (n_nodes, te), 0) == recv_l_ref[...],
        1.0, 0.0).astype(jnp.bfloat16)                         # (N, te)
    agg_ref[...] += jnp.dot(p_recv_t, upd_e.astype(jnp.bfloat16),
                            preferred_element_type=jnp.float32)

    # --- fused node phase: runs once, on the last edge tile -----------------
    # TODO(synk): for node tables too large for VMEM, split the node MLP over
    # row tiles (separate grid axis) and keep node_feats in HBM (pl.ANY).
    @pl.when(step == pl.num_programs(0) - 1)
    def _():
        x_n = node_ref[...]
        hn = (jnp.dot(node_bf16, wx_ref[...], preferred_element_type=jnp.float32)
              + jnp.dot(agg_ref[...].astype(jnp.bfloat16), wa_ref[...],
                        preferred_element_type=jnp.float32)
              + bn1_ref[...])
        hn = jnp.maximum(hn, 0.0)
        yn = jnp.dot(hn.astype(jnp.bfloat16), wn2_ref[...],
                     preferred_element_type=jnp.float32) + bn2_ref[...]
        node_out_ref[...] = x_n + _layer_norm(yn, gn_ref[...], btn_ref[...])


def graphnet_block_pallas(node_feats, edge_feats, send_sub, recv_sub, recv_lane,
                          edge_params, node_params):
    n, dn = node_feats.shape
    num_edges, de = edge_feats.shape
    w_s, w_r, w_e, be1, we2, be2, ge, bte = edge_params
    w_x, w_a, bn1, wn2, bn2, gn, btn = node_params
    dhe = w_s.shape[1]
    dhn = w_x.shape[1]
    te = _edge_tile(num_edges)

    tile_e = lambda i: (i, 0)
    tile_l = lambda i: (0, i)
    const = lambda i: (0, 0)

    in_specs = [
        pl.BlockSpec((te, 1), tile_e),      # sender ids (sublane layout)
        pl.BlockSpec((te, 1), tile_e),      # receiver ids (sublane layout)
        pl.BlockSpec((1, te), tile_l),      # receiver ids (lane layout)
        pl.BlockSpec((n, dn), const),       # node table, fully VMEM-resident
        pl.BlockSpec((te, de), tile_e),     # edge-feature tile
        pl.BlockSpec((dn, dhe), const),     # w_s
        pl.BlockSpec((dn, dhe), const),     # w_r
        pl.BlockSpec((de, dhe), const),     # w_e
        pl.BlockSpec((1, dhe), const),      # b1 (edge)
        pl.BlockSpec((dhe, de), const),     # w2 (edge)
        pl.BlockSpec((1, de), const),       # b2 (edge)
        pl.BlockSpec((1, de), const),       # gamma (edge)
        pl.BlockSpec((1, de), const),       # beta (edge)
        pl.BlockSpec((dn, dhn), const),     # w_x
        pl.BlockSpec((de, dhn), const),     # w_a
        pl.BlockSpec((1, dhn), const),      # b1 (node)
        pl.BlockSpec((dhn, dn), const),     # w2 (node)
        pl.BlockSpec((1, dn), const),       # b2 (node)
        pl.BlockSpec((1, dn), const),       # gamma (node)
        pl.BlockSpec((1, dn), const),       # beta (node)
    ]
    out_specs = (pl.BlockSpec((te, de), tile_e),   # residual edge features
                 pl.BlockSpec((n, dn), const))     # residual node features
    out_shape = (jax.ShapeDtypeStruct((num_edges, de), jnp.float32),
                 jax.ShapeDtypeStruct((n, dn), jnp.float32))

    edge_out, node_out = pl.pallas_call(
        _block_kernel,
        grid=(num_edges // te,),
        in_specs=in_specs,
        out_specs=out_specs,
        out_shape=out_shape,
        scratch_shapes=[pltpu.VMEM((n, de), jnp.float32)],   # 2-D lane-dense agg
        compiler_params=pltpu.CompilerParams(
            dimension_semantics=("arbitrary",),   # agg accumulated across tiles
            vmem_limit_bytes=VMEM_LIMIT),
    )(send_sub, recv_sub, recv_lane, node_feats, edge_feats,
      w_s, w_r, w_e, be1, we2, be2, ge, bte,
      w_x, w_a, bn1, wn2, bn2, gn, btn)
    # TODO(synk): on v7x (2 TCs), add a leading "parallel" axis of size 2 with
    # per-half accumulators and sum them afterwards for ~2x edge-phase throughput.
    return node_out, edge_out


# ----------------------------------------------------------------------------
# Parameter construction (shapes follow the PyTorch __init__; weights bf16,
# hidden dims zero-padded only to 8 sublanes — correctness neutral)
# ----------------------------------------------------------------------------
def _linear_params(key, din, dout, scale=0.1):
    kw, kb = jax.random.split(key)
    w = (jax.random.normal(kw, (din, dout), jnp.float32) * scale).astype(jnp.bfloat16)
    b = jax.random.normal(kb, (1, dout), jnp.float32) * 0.01
    return w, b


def _mlp_params(key, din, dh, dout, layer_norm=True, pad_out=False):
    dh_p = _round_up(dh, 8)                             # sublane-aligned hidden
    dout_p = _round_up(dout, 128) if pad_out else dout  # lane-dense decoder out only
    k1, k2 = jax.random.split(key)
    w1, b1 = _linear_params(k1, din, dh)
    w2, b2 = _linear_params(k2, dh, dout)
    w1 = jnp.pad(w1, ((0, 0), (0, dh_p - dh)))
    b1 = jnp.pad(b1, ((0, 0), (0, dh_p - dh)))
    w2 = jnp.pad(w2, ((0, dh_p - dh), (0, dout_p - dout)))
    b2 = jnp.pad(b2, ((0, 0), (0, dout_p - dout)))
    p = [w1, b1, w2, b2]
    if layer_norm:
        p += [jnp.ones((1, dout), jnp.float32), jnp.zeros((1, dout), jnp.float32)]
    return tuple(p)


def _block_edge_params(key, dn, de):
    he = _round_up(de, 8)
    k1, k2 = jax.random.split(key)
    w1, b1 = _linear_params(k1, 2 * dn + de, de)
    w2, b2 = _linear_params(k2, de, de)
    w1 = jnp.pad(w1, ((0, 0), (0, he - de)))
    b1 = jnp.pad(b1, ((0, 0), (0, he - de)))
    w2 = jnp.pad(w2, ((0, he - de), (0, 0)))
    w_s, w_r, w_e = w1[:dn], w1[dn:2 * dn], w1[2 * dn:]   # split-K slices
    return (w_s, w_r, w_e, b1, w2, b2,
            jnp.ones((1, de), jnp.float32), jnp.zeros((1, de), jnp.float32))


def _block_node_params(key, dn, de):
    hn = _round_up(dn, 8)
    k1, k2 = jax.random.split(key)
    w1, b1 = _linear_params(k1, dn + de, dn)
    w2, b2 = _linear_params(k2, dn, dn)
    w1 = jnp.pad(w1, ((0, 0), (0, hn - dn)))
    b1 = jnp.pad(b1, ((0, 0), (0, hn - dn)))
    w2 = jnp.pad(w2, ((0, hn - dn), (0, 0)))
    w_x, w_a = w1[:dn], w1[dn:]                            # split-K slices
    return (w_x, w_a, b1, w2, b2,
            jnp.ones((1, dn), jnp.float32), jnp.zeros((1, dn), jnp.float32))


class MeshGraphNetPallas:
    """Encode-process-decode MeshGraphNet, node-level prediction path."""

    def __init__(self, node_input_size, edge_input_size,
                 node_encoder_hidden_size, edge_encoder_hidden_size,
                 node_message_passing_mlp_hidden_size, edge_message_passing_mlp_hidden_size,
                 node_decoder_hidden_size, output_size, message_passing_steps,
                 dropout_prob, graph_level_prediction, key,
                 global_condition_size=0, pooling_type=None):
        # TODO(synk): graph-level prediction path (global_{mean,max}_pool + dropout +
        # Linear decoder) and global_condition repeat_interleave conditioning are not
        # implemented; only the node-level decoder path is covered here.
        assert not graph_level_prediction
        assert global_condition_size == 0, "global conditioning not implemented"
        self._dropout_prob = dropout_prob  # dropout only used in the graph-level path
        self.output_size = output_size

        dn = node_message_passing_mlp_hidden_size
        de = edge_message_passing_mlp_hidden_size
        keys = jax.random.split(key, 3 + message_passing_steps)

        self.node_encoder = _mlp_params(keys[0], node_input_size,
                                        node_encoder_hidden_size, dn)
        self.edge_encoder = _mlp_params(keys[1], edge_input_size,
                                        edge_encoder_hidden_size, de)

        self.blocks = []
        for s in range(message_passing_steps):
            ke, kn = jax.random.split(keys[3 + s])
            self.blocks.append((_block_edge_params(ke, dn, de),
                                _block_node_params(kn, dn, de)))

        self.decoder = _mlp_params(
            keys[2], dn, node_decoder_hidden_size, output_size,
            layer_norm=False, pad_out=True)   # lane-dense decoder output, cropped later

    def __call__(self, node_features, edge_features, edge_indices):
        # index preprocessing hoisted out of the message-passing loop:
        # sublane layout (E,1) for the one-hot gathers, lane layout (1,E) for
        # the one-hot scatter.
        senders = edge_indices[0].astype(jnp.int32)
        receivers = edge_indices[1].astype(jnp.int32)
        send_sub = senders.reshape(-1, 1)
        recv_sub = receivers.reshape(-1, 1)
        recv_lane = receivers.reshape(1, -1)

        x = mlp_pallas(node_features, self.node_encoder, layer_norm=True)
        e = mlp_pallas(edge_features, self.edge_encoder, layer_norm=True)
        # TODO(synk): carry x/e as bf16 between blocks once deeper processors are
        # validated (halves inter-kernel HBM traffic).
        for edge_p, node_p in self.blocks:
            x, e = graphnet_block_pallas(x, e, send_sub, recv_sub, recv_lane,
                                         edge_p, node_p)
        return mlp_pallas(x, self.decoder, layer_norm=False,
                          out_features=self.output_size)


# ----------------------------------------------------------------------------
# Pure-JAX f32 reference (sanity check of the Pallas kernels)
# ----------------------------------------------------------------------------
def _ref_mlp(x, p, layer_norm, out_features=None):
    w1 = p[0].astype(jnp.float32)
    w2 = p[2].astype(jnp.float32)
    h = jnp.maximum(x @ w1 + p[1], 0.0)
    y = h @ w2 + p[3]
    if layer_norm:
        y = _layer_norm(y, p[4], p[5])
    if out_features is not None and out_features != y.shape[1]:
        y = y[:, :out_features]
    return y


def _ref_block(x, e, senders, receivers, edge_p, node_p):
    w_s, w_r, w_e, be1, we2, be2, ge, bte = edge_p
    w1e = jnp.concatenate([w_s, w_r, w_e], axis=0).astype(jnp.float32)
    edge_in = jnp.concatenate([x[senders], x[receivers], e], axis=-1)
    he = jnp.maximum(edge_in @ w1e + be1, 0.0)
    upd_e = _layer_norm(he @ we2.astype(jnp.float32) + be2, ge, bte)
    agg = jnp.zeros((x.shape[0], upd_e.shape[1]), jnp.float32).at[receivers].add(upd_e)
    w_x, w_a, bn1, wn2, bn2, gn, btn = node_p
    w1n = jnp.concatenate([w_x, w_a], axis=0).astype(jnp.float32)
    node_in = jnp.concatenate([x, agg], axis=-1)
    hn = jnp.maximum(node_in @ w1n + bn1, 0.0)
    upd_n = _layer_norm(hn @ wn2.astype(jnp.float32) + bn2, gn, btn)
    return x + upd_n, e + upd_e


def _ref_forward(model, node_features, edge_features, edge_indices):
    senders = edge_indices[0].astype(jnp.int32)
    receivers = edge_indices[1].astype(jnp.int32)
    x = _ref_mlp(node_features, model.node_encoder, True)
    e = _ref_mlp(edge_features, model.edge_encoder, True)
    for edge_p, node_p in model.blocks:
        x, e = _ref_block(x, e, senders, receivers, edge_p, node_p)
    return _ref_mlp(x, model.decoder, False, out_features=model.output_size)


# ----------------------------------------------------------------------------
if __name__ == "__main__":
    key = jax.random.PRNGKey(0)
    N, E = 64, 128
    node_input_size, edge_input_size = 8, 4
    hidden = 32
    output_size = 3

    k_params, k_x, k_e, k_s, k_r = jax.random.split(key, 5)
    model = MeshGraphNetPallas(
        node_input_size=node_input_size,
        edge_input_size=edge_input_size,
        node_encoder_hidden_size=hidden,
        edge_encoder_hidden_size=hidden,
        node_message_passing_mlp_hidden_size=hidden,
        edge_message_passing_mlp_hidden_size=hidden,
        node_decoder_hidden_size=hidden,
        output_size=output_size,
        message_passing_steps=2,
        dropout_prob=0.0,
        graph_level_prediction=False,
        key=k_params)

    node_features = jax.random.normal(k_x, (N, node_input_size), jnp.float32)
    edge_features = jax.random.normal(k_e, (E, edge_input_size), jnp.float32)
    senders = jax.random.randint(k_s, (E,), 0, N, jnp.int32)
    receivers = jax.random.randint(k_r, (E,), 0, N, jnp.int32)
    edge_indices = jnp.stack([senders, receivers], axis=0)  # (2, E)

    out = model(node_features, edge_features, edge_indices)
    jax.block_until_ready(out)

    ref = _ref_forward(model, node_features, edge_features, edge_indices)
    assert out.shape == (N, output_size), out.shape
    # kernel uses bf16 MXU operands (f32 accumulate / LayerNorm); reference is f32
    assert jnp.allclose(out, ref, atol=5e-2, rtol=5e-2), float(jnp.max(jnp.abs(out - ref)))

    print("KERNEL_OK")
</pallas_src>

<mosaic_0001>
module attributes {stable_mosaic.version = 11 : i64} {
  func.func @_mlp_ln_kernel(%arg0: i32, %arg1: memref<64x8xf32, #tpu.memory_space<vmem>>, %arg2: memref<8x32xbf16, #tpu.memory_space<vmem>>, %arg3: memref<1x32xf32, #tpu.memory_space<vmem>>, %arg4: memref<32x32xbf16, #tpu.memory_space<vmem>>, %arg5: memref<1x32xf32, #tpu.memory_space<vmem>>, %arg6: memref<1x32xf32, #tpu.memory_space<vmem>>, %arg7: memref<1x32xf32, #tpu.memory_space<vmem>>, %arg8: memref<64x32xf32, #tpu.memory_space<vmem>>) attributes {dimension_semantics = [#tpu.dimension_semantics<parallel>], iteration_bounds = array<i64: 1>, scalar_prefetch = 0 : i64, scratch_operands = 0 : i64, tpu.core_type = #tpu.core_type<tc>, window_params = [{transform_indices = @transform_0, window_bounds = array<i64: 64, 8>}, {pipeline_mode = #tpu.pipeline_mode<synchronous>, transform_indices = @transform_1, window_bounds = array<i64: 8, 32>}, {pipeline_mode = #tpu.pipeline_mode<synchronous>, transform_indices = @transform_2, window_bounds = array<i64: 1, 32>}, {pipeline_mode = #tpu.pipeline_mode<synchronous>, transform_indices = @transform_3, window_bounds = array<i64: 32, 32>}, {pipeline_mode = #tpu.pipeline_mode<synchronous>, transform_indices = @transform_4, window_bounds = array<i64: 1, 32>}, {pipeline_mode = #tpu.pipeline_mode<synchronous>, transform_indices = @transform_5, window_bounds = array<i64: 1, 32>}, {pipeline_mode = #tpu.pipeline_mode<synchronous>, transform_indices = @transform_6, window_bounds = array<i64: 1, 32>}, {transform_indices = @transform_7, window_bounds = array<i64: 64, 32>}]} {
    %c0 = arith.constant 0 : index
    %c0_0 = arith.constant 0 : index
    %0 = vector.load %arg1[%c0, %c0_0] : memref<64x8xf32, #tpu.memory_space<vmem>>, vector<64x8xf32>
    %1 = arith.truncf %0 : vector<64x8xf32> to vector<64x8xbf16>
    %c0_1 = arith.constant 0 : index
    %c0_2 = arith.constant 0 : index
    %2 = vector.load %arg2[%c0_1, %c0_2] : memref<8x32xbf16, #tpu.memory_space<vmem>>, vector<8x32xbf16>
    %cst = arith.constant dense<0.000000e+00> : vector<64x32xf32>
    %3 = tpu.matmul %1, %2, %cst {dimension_numbers = #tpu.dot_dimension_numbers<[1], [0], [0], [1], [0, 0, 1, 1], [], []>} : vector<64x8xbf16>, vector<8x32xbf16>, vector<64x32xf32> -> vector<64x32xf32>
    %c0_3 = arith.constant 0 : index
    %c0_4 = arith.constant 0 : index
    %4 = vector.load %arg3[%c0_3, %c0_4] : memref<1x32xf32, #tpu.memory_space<vmem>>, vector<1x32xf32>
    %5 = vector.broadcast %4 : vector<1x32xf32> to vector<64x32xf32>
    %6 = arith.addf %3, %5 : vector<64x32xf32>
    %cst_5 = arith.constant 0.000000e+00 : f32
    %7 = vector.broadcast %cst_5 : f32 to vector<64x32xf32>
    %8 = arith.maximumf %6, %7 : vector<64x32xf32>
    %9 = arith.truncf %8 : vector<64x32xf32> to vector<64x32xbf16>
    %c0_6 = arith.constant 0 : index
    %c0_7 = arith.constant 0 : index
    %10 = vector.load %arg4[%c0_6, %c0_7] : memref<32x32xbf16, #tpu.memory_space<vmem>>, vector<32x32xbf16>
    %cst_8 = arith.constant dense<0.000000e+00> : vector<64x32xf32>
    %11 = tpu.matmul %9, %10, %cst_8 {dimension_numbers = #tpu.dot_dimension_numbers<[1], [0], [0], [1], [0, 0, 1, 1], [], []>} : vector<64x32xbf16>, vector<32x32xbf16>, vector<64x32xf32> -> vector<64x32xf32>
    %c0_9 = arith.constant 0 : index
    %c0_10 = arith.constant 0 : index
    %12 = vector.load %arg5[%c0_9, %c0_10] : memref<1x32xf32, #tpu.memory_space<vmem>>, vector<1x32xf32>
    %13 = vector.broadcast %12 : vector<1x32xf32> to vector<64x32xf32>
    %14 = arith.addf %11, %13 : vector<64x32xf32>
    %c0_11 = arith.constant 0 : index
    %c0_12 = arith.constant 0 : index
    %15 = vector.load %arg6[%c0_11, %c0_12] : memref<1x32xf32, #tpu.memory_space<vmem>>, vector<1x32xf32>
    %c0_13 = arith.constant 0 : index
    %c0_14 = arith.constant 0 : index
    %16 = vector.load %arg7[%c0_13, %c0_14] : memref<1x32xf32, #tpu.memory_space<vmem>>, vector<1x32xf32>
    %cst_15 = arith.constant dense<0.000000e+00> : vector<64xf32>
    %17 = vector.multi_reduction <add>, %14, %cst_15 [1] : vector<64x32xf32> to vector<64xf32>
    %18 = vector.shape_cast %17 : vector<64xf32> to vector<64x1xf32>
    %cst_16 = arith.constant 3.200000e+01 : f32
    %19 = vector.broadcast %cst_16 : f32 to vector<64x1xf32>
    %20 = arith.divf %18, %19 : vector<64x1xf32>
    %21 = vector.broadcast %20 : vector<64x1xf32> to vector<64x32xf32>
    %22 = arith.subf %14, %21 : vector<64x32xf32>
    %23 = arith.mulf %22, %22 : vector<64x32xf32>
    %cst_17 = arith.constant dense<0.000000e+00> : vector<64xf32>
    %24 = vector.multi_reduction <add>, %23, %cst_17 [1] : vector<64x32xf32> to vector<64xf32>
    %25 = vector.shape_cast %24 : vector<64xf32> to vector<64x1xf32>
    %cst_18 = arith.constant 3.200000e+01 : f32
    %26 = vector.broadcast %cst_18 : f32 to vector<64x1xf32>
    %27 = arith.divf %25, %26 : vector<64x1xf32>
    %28 = vector.broadcast %20 : vector<64x1xf32> to vector<64x32xf32>
    %29 = arith.subf %14, %28 : vector<64x32xf32>
    %cst_19 = arith.constant 9.99999974E-6 : f32
    %30 = vector.broadcast %cst_19 : f32 to vector<64x1xf32>
    %31 = arith.addf %27, %30 : vector<64x1xf32>
    %32 = math.rsqrt %31 : vector<64x1xf32>
    %33 = vector.broadcast %32 : vector<64x1xf32> to vector<64x32xf32>
    %34 = arith.mulf %29, %33 : vector<64x32xf32>
    %35 = vector.broadcast %15 : vector<1x32xf32> to vector<64x32xf32>
    %36 = arith.mulf %34, %35 : vector<64x32xf32>
    %37 = vector.broadcast %16 : vector<1x32xf32> to vector<64x32xf32>
    %38 = arith.addf %36, %37 : vector<64x32xf32>
    %c0_20 = arith.constant 0 : index
    %c0_21 = arith.constant 0 : index
    %39 = vector.load %arg8[%c0_20, %c0_21] : memref<64x32xf32, #tpu.memory_space<vmem>>, vector<64x32xf32>
    tpu.vector_store %arg8[%c0_20, %c0_21], %38 {strides = array<i32>} : memref<64x32xf32, #tpu.memory_space<vmem>>, vector<64x32xf32>,
    return
  }
  func.func @transform_0(%arg0: i32) -> (i32, i32) {
    %c0_i32 = arith.constant 0 : i32
    %c0_i32_0 = arith.constant 0 : i32
    return %arg0, %c0_i32 : i32, i32
  }
  func.func @transform_1(%arg0: i32) -> (i32, i32) {
    %c0_i32 = arith.constant 0 : i32
    %c0_i32_0 = arith.constant 0 : i32
    %c0_i32_1 = arith.constant 0 : i32
    return %c0_i32, %c0_i32_0 : i32, i32
  }
  func.func @transform_2(%arg0: i32) -> (i32, i32) {
    %c0_i32 = arith.constant 0 : i32
    %c0_i32_0 = arith.constant 0 : i32
    %c0_i32_1 = arith.constant 0 : i32
    return %c0_i32, %c0_i32_0 : i32, i32
  }
  func.func @transform_3(%arg0: i32) -> (i32, i32) {
    %c0_i32 = arith.constant 0 : i32
    %c0_i32_0 = arith.constant 0 : i32
    %c0_i32_1 = arith.constant 0 : i32
    return %c0_i32, %c0_i32_0 : i32, i32
  }
  func.func @transform_4(%arg0: i32) -> (i32, i32) {
    %c0_i32 = arith.constant 0 : i32
    %c0_i32_0 = arith.constant 0 : i32
    %c0_i32_1 = arith.constant 0 : i32
    return %c0_i32, %c0_i32_0 : i32, i32
  }
  func.func @transform_5(%arg0: i32) -> (i32, i32) {
    %c0_i32 = arith.constant 0 : i32
    %c0_i32_0 = arith.constant 0 : i32
    %c0_i32_1 = arith.constant 0 : i32
    return %c0_i32, %c0_i32_0 : i32, i32
  }
  func.func @transform_6(%arg0: i32) -> (i32, i32) {
    %c0_i32 = arith.constant 0 : i32
    %c0_i32_0 = arith.constant 0 : i32
    %c0_i32_1 = arith.constant 0 : i32
    return %c0_i32, %c0_i32_0 : i32, i32
  }
  func.func @transform_7(%arg0: i32) -> (i32, i32) {
    %c0_i32 = arith.constant 0 : i32
    %c0_i32_0 = arith.constant 0 : i32
    return %arg0, %c0_i32 : i32, i32
  }
}

</mosaic_0001>

<llo_original>
// kernel: tpu_custom_call.1
$region0: #{tpu_custom_call.1}
  #allocation0 [shape = 'u32[]', space=smem, size = 0x4, offset = 0x4, fixed_abs, tag = 'smem constant byte address 0x4 - core index']
  #allocation1 [shape = 'u32[144,128]{1,0:T(1,128)}', space=vmem, size = 0x12000, scoped, tag = 'internal scratch']
  %s0 = inlined_call_operand.vmem [shape: f32[64,8], index: 0, kind: input, shape index: {}]
  %s1 = inlined_call_operand.vmem [shape: bf16[8,32], index: 1, kind: input, shape index: {}]
  %s2 = inlined_call_operand.vmem [shape: f32[1,32], index: 2, kind: input, shape index: {}]
  %s3 = inlined_call_operand.vmem [shape: bf16[32,32], index: 3, kind: input, shape index: {}]
  %s4 = inlined_call_operand.vmem [shape: f32[1,32], index: 4, kind: input, shape index: {}]
  %s5 = inlined_call_operand.vmem [shape: f32[1,32], index: 5, kind: input, shape index: {}]
  %s6 = inlined_call_operand.vmem [shape: f32[1,32], index: 6, kind: input, shape index: {}]
  %s7 = inlined_call_operand.vmem [shape: f32[64,32], index: 7, kind: output, shape index: {}]
  %s8 = sld [smem:[#allocation0]]
  $region38: #{tpu_custom_call.1} parent=0
    _
  %s10 = ssub.s32 1, %s8
  %s11 = scalar_select 0, %s10, %s8
  // Predicated region
  $region2: #{tpu_custom_call.1} parent=0 // pred_check
    _
  $region3: #{tpu_custom_call.1} parent=0 // pred_check_branch
    %13 = sbr.rel (0) target = $region5
  $region4: #{tpu_custom_call.1} parent=0 // pred_region
    _
  $region5: #{tpu_custom_call.1} parent=0 // pred_fallthru
    _
  // Predicated region
  $region6: #{tpu_custom_call.1} parent=0 // pred_check
    _
  $region7: #{tpu_custom_call.1} parent=0 // pred_check_branch
    %15 = sbr.rel (0) target = $region9
  $region8: #{tpu_custom_call.1} parent=0 // pred_region
    _
  $region9: #{tpu_custom_call.1} parent=0 // pred_fallthru
    _
  // Predicated region
  $region10: #{tpu_custom_call.1} parent=0 // pred_check
    _
  $region11: #{tpu_custom_call.1} parent=0 // pred_check_branch
    %17 = sbr.rel (0) target = $region13
  $region12: #{tpu_custom_call.1} parent=0 // pred_region
    _
  $region13: #{tpu_custom_call.1} parent=0 // pred_fallthru
    _
  // Predicated region
  $region14: #{tpu_custom_call.1} parent=0 // pred_check
    _
  $region15: #{tpu_custom_call.1} parent=0 // pred_check_branch
    %19 = sbr.rel (0) target = $region17
  $region16: #{tpu_custom_call.1} parent=0 // pred_region
    _
  $region17: #{tpu_custom_call.1} parent=0 // pred_fallthru
    _
  // Predicated region
  $region18: #{tpu_custom_call.1} parent=0 // pred_check
    _
  $region19: #{tpu_custom_call.1} parent=0 // pred_check_branch
    %21 = sbr.rel (0) target = $region21
  $region20: #{tpu_custom_call.1} parent=0 // pred_region
    _
  $region21: #{tpu_custom_call.1} parent=0 // pred_fallthru
    _
  // Predicated region
  $region22: #{tpu_custom_call.1} parent=0 // pred_check
    _
  $region23: #{tpu_custom_call.1} parent=0 // pred_check_branch
    %23 = sbr.rel (0) target = $region25
  $region24: #{tpu_custom_call.1} parent=0 // pred_region
    _
  $region25: #{tpu_custom_call.1} parent=0 // pred_fallthru
    _
  // Predicated region
  $region26: #{tpu_custom_call.1} parent=0 // pred_check
    _
  $region27: #{tpu_custom_call.1} parent=0 // pred_check_branch
    %25 = sbr.rel (0) target = $region29
  $region28: #{tpu_custom_call.1} parent=0 // pred_region
    _
  $region29: #{tpu_custom_call.1} parent=0 // pred_fallthru
    _
  %v27 = vld [vmem:[%s0] sm:$0xff]
  %v28 = vld [vmem:[%s0 + $0x8] sm:$0xff]
  %v29 = vld [vmem:[%s0 + $0x10] sm:$0xff]
  %v30 = vld [vmem:[%s0 + $0x18] sm:$0xff]
  %v31 = vld [vmem:[%s0 + $0x20] sm:$0xff]
  %v32 = vld [vmem:[%s0 + $0x28] sm:$0xff]
  %v33 = vld [vmem:[%s0 + $0x30] sm:$0xff]
  %v34 = vld [vmem:[%s0 + $0x38] sm:$0xff]
  %v35 = vpack.c.bf16 %v28, %v27
  %v36 = vpack.c.bf16 %v30, %v29
  %v37 = vpack.c.bf16 %v32, %v31
  %v38 = vpack.c.bf16 %v34, %v33
  %v39 = vld [vmem:[%s1] sm:$0xf]
  %v40 = vld [vmem:[%s2] sm:$0x1]
  %v42 = vlaneseq
  %v43 = vshrl.u32 %v42, 7
  %v44 = vsub.s32 0, %v43
  %v45 = vrot.slane %v40, %v44
  %vm47 = vcmask 64512
  %v49 = vsel %vm47, %v35, 0
  %v52 = vsel %vm47, %v36, 0
  %v55 = vsel %vm47, %v37, 0
  %v58 = vsel %vm47, %v38, 0
  %vm60 = vcmask 1043456
  %v62 = vsel %vm60, %v39, 0
  %64 = vmatprep.subr.bf16.mxu0 0
  %65 = vmatpush1.bf16.msra.mxu0 %v62
  %66 = vmatprep.subr.bf16.mxu0 0
  %67 = vmatpush1.bf16.msra.mxu0 0
  %68 = vmatprep.subr.bf16.mxu0 0
  %69 = vmatpush1.bf16.msra.mxu0 0
  %70 = vmatprep.subr.bf16.mxu0 0
  %71 = vmatpush1.bf16.msra.mxu0 0
  %72 = vmatprep.subr.bf16.mxu0 0
  %73 = vmatpush1.bf16.msra.mxu0 0
  %74 = vmatprep.subr.bf16.mxu0 0
  %75 = vmatpush1.bf16.msra.mxu0 0
  %76 = vmatprep.subr.bf16.mxu0 0
  %77 = vmatpush1.bf16.msra.mxu0 0
  %78 = vmatprep.subr.bf16.mxu0 0
  %79 = vmatpush1.bf16.msra.mxu0 0
  %80 = vmatprep.subr.bf16.mxu0 0
  %81 = vmatpush1.bf16.msra.mxu0 0
  %82 = vmatprep.subr.bf16.mxu0 0
  %83 = vmatpush1.bf16.msra.mxu0 0
  %84 = vmatprep.subr.bf16.mxu0 0
  %85 = vmatpush1.bf16.msra.mxu0 0
  %86 = vmatprep.subr.bf16.mxu0 0
  %87 = vmatpush1.bf16.msra.mxu0 0
  %88 = vmatprep.subr.bf16.mxu0 0
  %89 = vmatpush1.bf16.msra.mxu0 0
  %90 = vmatprep.subr.bf16.mxu0 0
  %91 = vmatpush1.bf16.msra.mxu0 0
  %92 = vmatprep.subr.bf16.mxu0 0
  %93 = vmatpush1.bf16.msra.mxu0 0
  %94 = vmatprep.subr.bf16.mxu0 0
  %95 = vmatpush1.bf16.msra.mxu0 0
  %96 = vmatprep.mubr.bf16.mxu0 0
  %97 = vmatmul.mubr.bf16.gmra.mrb[0].mxu0 %v49
  %v98 = vpop.f32.mrb[0].mxu0
  %v99 = vadd.f32 %v45, %v98
  %v100 = vpop.f32.mrb[0].mxu0
  %v101 = vpop.f32.mrb[0].mxu0
  %v102 = vadd.f32 %v45, %v101
  %v103 = vpop.f32.mrb[0].mxu0
  %104 = vmatprep.mubr.bf16.mxu0 0
  %105 = vmatmul.mubr.bf16.gmra.mrb[0].mxu0 %v52
  %v106 = vpop.f32.mrb[0].mxu0
  %v107 = vadd.f32 %v45, %v106
  %v108 = vpop.f32.mrb[0].mxu0
  %v109 = vpop.f32.mrb[0].mxu0
  %v110 = vadd.f32 %v45, %v109
  %v111 = vpop.f32.mrb[0].mxu0
  %112 = vmatprep.mubr.bf16.mxu0 0
  %113 = vmatmul.mubr.bf16.gmra.mrb[0].mxu0 %v55
  %v114 = vpop.f32.mrb[0].mxu0
  %v115 = vadd.f32 %v45, %v114
  %v116 = vpop.f32.mrb[0].mxu0
  %v117 = vpop.f32.mrb[0].mxu0
  %v118 = vadd.f32 %v45, %v117
  %v119 = vpop.f32.mrb[0].mxu0
  %120 = vmatprep.mubr.bf16.mxu0 0
  %121 = vmatmul.mubr.bf16.gmra.mrb[0].mxu0 %v58
  %v122 = vpop.f32.mrb[0].mxu0
  %v123 = vadd.f32 %v45, %v122
  %v124 = vpop.f32.mrb[0].mxu0
  %v125 = vpop.f32.mrb[0].mxu0
  %v126 = vadd.f32 %v45, %v125
  %v127 = vpop.f32.mrb[0].mxu0
  %128 = vdwg.mxu0
  %v129 = vmax.f32 %v99, 0.0
  %v130 = vmax.f32 %v102, 0.0
  %v131 = vmax.f32 %v107, 0.0
  %v132 = vmax.f32 %v110, 0.0
  %v133 = vmax.f32 %v115, 0.0
  %v134 = vmax.f32 %v118, 0.0
  %v135 = vmax.f32 %v123, 0.0
  %v136 = vmax.f32 %v126, 0.0
  %v137 = vpack.c.bf16 %v130, %v129
  %v138 = vpack.c.bf16 %v132, %v131
  %v139 = vpack.c.bf16 %v134, %v133
  %v140 = vpack.c.bf16 %v136, %v135
  %v141 = vld [vmem:[%s3] sm:$0xf]
  %v142 = vld [vmem:[%s3 + $0x4] sm:$0xf]
  %v143 = vld [vmem:[%s3 + $0x8] sm:$0xf]
  %v144 = vld [vmem:[%s3 + $0xc] sm:$0xf]
  %v145 = vld [vmem:[%s4] sm:$0x1]
  %v147 = vlaneseq
  %v148 = vshrl.u32 %v147, 7
  %v149 = vsub.s32 0, %v148
  %v150 = vrot.slane %v145, %v149
  %v156 = vunpack.c.l.b16 %v141
  %v157 = vunpack.c.l.b16 %v142
  %v158 = vunpack.c.l.b16 %v143
  %v159 = vunpack.c.l.b16 %v144
  %v160 = vpack.c.b16 %v157, %v156
  %v161 = vpack.c.b16 %v159, %v158
  %vm164 = vcmask 261120
  %v166 = vsel %vm164, %v137, 0
  %v169 = vsel %vm164, %v138, 0
  %v172 = vsel %vm164, %v139, 0
  %v175 = vsel %vm164, %v140, 0
  %177 = vmatprep.subr.bf16.mxu0 0
  %178 = vmatpush1.bf16.msra.mxu0 %v160
  %179 = vmatprep.subr.bf16.mxu0 0
  %180 = vmatpush1.bf16.msra.mxu0 %v161
  %181 = vmatprep.subr.bf16.mxu0 0
  %182 = vmatpush1.bf16.msra.mxu0 0
  %183 = vmatprep.subr.bf16.mxu0 0
  %184 = vmatpush1.bf16.msra.mxu0 0
  %185 = vmatprep.subr.bf16.mxu0 0
  %186 = vmatpush1.bf16.msra.mxu0 0
  %187 = vmatprep.subr.bf16.mxu0 0
  %188 = vmatpush1.bf16.msra.mxu0 0
  %189 = vmatprep.subr.bf16.mxu0 0
  %190 = vmatpush1.bf16.msra.mxu0 0
  %191 = vmatprep.subr.bf16.mxu0 0
  %192 = vmatpush1.bf16.msra.mxu0 0
  %193 = vmatprep.subr.bf16.mxu0 0
  %194 = vmatpush1.bf16.msra.mxu0 0
  %195 = vmatprep.subr.bf16.mxu0 0
  %196 = vmatpush1.bf16.msra.mxu0 0
  %197 = vmatprep.subr.bf16.mxu0 0
  %198 = vmatpush1.bf16.msra.mxu0 0
  %199 = vmatprep.subr.bf16.mxu0 0
  %200 = vmatpush1.bf16.msra.mxu0 0
  %201 = vmatprep.subr.bf16.mxu0 0
  %202 = vmatpush1.bf16.msra.mxu0 0
  %203 = vmatprep.subr.bf16.mxu0 0
  %204 = vmatpush1.bf16.msra.mxu0 0
  %205 = vmatprep.subr.bf16.mxu0 0
  %206 = vmatpush1.bf16.msra.mxu0 0
  %207 = vmatprep.subr.bf16.mxu0 0
  %208 = vmatpush1.bf16.msra.mxu0 0
  %209 = vmatprep.mubr.bf16.mxu0 0
  %210 = vmatmul.mubr.bf16.gmra.mrb[0].mxu0 %v166
  %v211 = vpop.f32.mrb[0].mxu0
  %v212 = vadd.f32 %v150, %v211
  %v213 = vpop.f32.mrb[0].mxu0
  %v214 = vpop.f32.mrb[0].mxu0
  %v215 = vadd.f32 %v150, %v214
  %v216 = vpop.f32.mrb[0].mxu0
  %217 = vmatprep.mubr.bf16.mxu0 0
  %218 = vmatmul.mubr.bf16.gmra.mrb[0].mxu0 %v169
  %v219 = vpop.f32.mrb[0].mxu0
  %v220 = vadd.f32 %v150, %v219
  %v221 = vpop.f32.mrb[0].mxu0
  %v222 = vpop.f32.mrb[0].mxu0
  %v223 = vadd.f32 %v150, %v222
  %v224 = vpop.f32.mrb[0].mxu0
  %225 = vmatprep.mubr.bf16.mxu0 0
  %226 = vmatmul.mubr.bf16.gmra.mrb[0].mxu0 %v172
  %v227 = vpop.f32.mrb[0].mxu0
  %v228 = vadd.f32 %v150, %v227
  %v229 = vpop.f32.mrb[0].mxu0
  %v230 = vpop.f32.mrb[0].mxu0
  %v231 = vadd.f32 %v150, %v230
  %v232 = vpop.f32.mrb[0].mxu0
  %233 = vmatprep.mubr.bf16.mxu0 0
  %234 = vmatmul.mubr.bf16.gmra.mrb[0].mxu0 %v175
  %v235 = vpop.f32.mrb[0].mxu0
  %v236 = vadd.f32 %v150, %v235
  %v237 = vpop.f32.mrb[0].mxu0
  %v238 = vpop.f32.mrb[0].mxu0
  %v239 = vadd.f32 %v150, %v238
  %v240 = vpop.f32.mrb[0].mxu0
  %241 = vdwg.mxu0
  %v242 = vld [vmem:[%s5] sm:$0x1]
  %v243 = vld [vmem:[%s6] sm:$0x1]
  %v244 = vsel %vm164, %v212, 0.0
  %245 = vadd.xlane.f32.xlu0 %v244
  %v246 = vpop.xlane.xlu0 %245
  %v247 = vsel %vm164, %v215, 0.0
  %248 = vadd.xlane.f32.xlu0 %v247
  %v249 = vpop.xlane.xlu0 %248
  %v250 = vsel %vm164, %v220, 0.0
  %251 = vadd.xlane.f32.xlu0 %v250
  %v252 = vpop.xlane.xlu0 %251
  %v253 = vsel %vm164, %v223, 0.0
  %254 = vadd.xlane.f32.xlu0 %v253
  %v255 = vpop.xlane.xlu0 %254
  %v256 = vsel %vm164, %v228, 0.0
  %257 = vadd.xlane.f32.xlu0 %v256
  %v258 = vpop.xlane.xlu0 %257
  %v259 = vsel %vm164, %v231, 0.0
  %260 = vadd.xlane.f32.xlu0 %v259
  %v261 = vpop.xlane.xlu0 %260
  %v262 = vsel %vm164, %v236, 0.0
  %263 = vadd.xlane.f32.xlu0 %v262
  %v264 = vpop.xlane.xlu0 %263
  %v265 = vsel %vm164, %v239, 0.0
  %266 = vadd.xlane.f32.xlu0 %v265
  %v267 = vpop.xlane.xlu0 %266
  %v268 = vrcp.pop 32.0
  %v269 = vmul.f32 %v246, %v268
  %v270 = vmul.f32 %v249, %v268
  %v271 = vmul.f32 %v252, %v268
  %v272 = vmul.f32 %v255, %v268
  %v273 = vmul.f32 %v258, %v268
  %v274 = vmul.f32 %v261, %v268
  %v275 = vmul.f32 %v264, %v268
  %v276 = vmul.f32 %v267, %v268
  %v277 = vsub.f32 %v212, %v269
  %v278 = vsub.f32 %v215, %v270
  %v279 = vsub.f32 %v220, %v271
  %v280 = vsub.f32 %v223, %v272
  %v281 = vsub.f32 %v228, %v273
  %v282 = vsub.f32 %v231, %v274
  %v283 = vsub.f32 %v236, %v275
  %v284 = vsub.f32 %v239, %v276
  %v285 = vmul.f32 %v277, %v277
  %v286 = vmul.f32 %v278, %v278
  %v287 = vmul.f32 %v279, %v279
  %v288 = vmul.f32 %v280, %v280
  %v289 = vmul.f32 %v281, %v281
  %v290 = vmul.f32 %v282, %v282
  %v291 = vmul.f32 %v283, %v283
  %v292 = vmul.f32 %v284, %v284
  %v293 = vsel %vm164, %v285, 0.0
  %294 = vadd.xlane.f32.xlu0 %v293
  %v295 = vpop.xlane.xlu0 %294
  %v296 = vsel %vm164, %v286, 0.0
  %297 = vadd.xlane.f32.xlu0 %v296
  %v298 = vpop.xlane.xlu0 %297
  %v299 = vsel %vm164, %v287, 0.0
  %300 = vadd.xlane.f32.xlu0 %v299
  %v301 = vpop.xlane.xlu0 %300
  %v302 = vsel %vm164, %v288, 0.0
  %303 = vadd.xlane.f32.xlu0 %v302
  %v304 = vpop.xlane.xlu0 %303
  %v305 = vsel %vm164, %v289, 0.0
  %306 = vadd.xlane.f32.xlu0 %v305
  %v307 = vpop.xlane.xlu0 %306
  %v308 = vsel %vm164, %v290, 0.0
  %309 = vadd.xlane.f32.xlu0 %v308
  %v310 = vpop.xlane.xlu0 %309
  %v311 = vsel %vm164, %v291, 0.0
  %312 = vadd.xlane.f32.xlu0 %v311
  %v313 = vpop.xlane.xlu0 %312
  %v314 = vsel %vm164, %v292, 0.0
  %315 = vadd.xlane.f32.xlu0 %v314
  %v316 = vpop.xlane.xlu0 %315
  %v317 = vmul.f32 %v295, %v268
  %v318 = vmul.f32 %v298, %v268
  %v319 = vmul.f32 %v301, %v268
  %v320 = vmul.f32 %v304, %v268
  %v321 = vmul.f32 %v307, %v268
  %v322 = vmul.f32 %v310, %v268
  %v323 = vmul.f32 %v313, %v268
  %v324 = vmul.f32 %v316, %v268
  %v325 = vadd.f32 %v317, 1e-05
  %v326 = vadd.f32 %v318, 1e-05
  %v327 = vadd.f32 %v319, 1e-05
  %v328 = vadd.f32 %v320, 1e-05
  %v329 = vadd.f32 %v321, 1e-05
  %v330 = vadd.f32 %v322, 1e-05
  %v331 = vadd.f32 %v323, 1e-05
  %v332 = vadd.f32 %v324, 1e-05
  %v333 = vrsqrt.pop %v325
  %v334 = vrsqrt.pop %v326
  %v335 = vrsqrt.pop %v327
  %v336 = vrsqrt.pop %v328
  %v337 = vrsqrt.pop %v329
  %v338 = vrsqrt.pop %v330
  %v339 = vrsqrt.pop %v331
  %v340 = vrsqrt.pop %v332
  %v341 = vmul.f32 %v277, %v333
  %v342 = vmul.f32 %v278, %v334
  %v343 = vmul.f32 %v279, %v335
  %v344 = vmul.f32 %v280, %v336
  %v345 = vmul.f32 %v281, %v337
  %v346 = vmul.f32 %v282, %v338
  %v347 = vmul.f32 %v283, %v339
  %v348 = vmul.f32 %v284, %v340
  %v350 = vlaneseq
  %v351 = vshrl.u32 %v350, 7
  %v352 = vsub.s32 0, %v351
  %v353 = vrot.slane %v242, %v352
  %v355 = vmul.f32 %v341, %v353
  %v356 = vmul.f32 %v342, %v353
  %v357 = vmul.f32 %v343, %v353
  %v358 = vmul.f32 %v344, %v353
  %v359 = vmul.f32 %v345, %v353
  %v360 = vmul.f32 %v346, %v353
  %v361 = vmul.f32 %v347, %v353
  %v362 = vmul.f32 %v348, %v353
  %v364 = vlaneseq
  %v365 = vshrl.u32 %v364, 7
  %v366 = vsub.s32 0, %v365
  %v367 = vrot.slane %v243, %v366
  %v369 = vadd.f32 %v355, %v367
  %v370 = vadd.f32 %v356, %v367
  %v371 = vadd.f32 %v357, %v367
  %v372 = vadd.f32 %v358, %v367
  %v373 = vadd.f32 %v359, %v367
  %v374 = vadd.f32 %v360, %v367
  %v375 = vadd.f32 %v361, %v367
  %v376 = vadd.f32 %v362, %v367
  %377 = vst.msk [vmem:[%s7] sm:$0xff] %vm164, %v369
  %378 = vst.msk [vmem:[%s7 + $0x8] sm:$0xff] %vm164, %v370
  %379 = vst.msk [vmem:[%s7 + $0x10] sm:$0xff] %vm164, %v371
  %380 = vst.msk [vmem:[%s7 + $0x18] sm:$0xff] %vm164, %v372
  %381 = vst.msk [vmem:[%s7 + $0x20] sm:$0xff] %vm164, %v373
  %382 = vst.msk [vmem:[%s7 + $0x28] sm:$0xff] %vm164, %v374
  %383 = vst.msk [vmem:[%s7 + $0x30] sm:$0xff] %vm164, %v375
  %384 = vst.msk [vmem:[%s7 + $0x38] sm:$0xff] %vm164, %v376
  // Predicated region
  $region30: #{tpu_custom_call.1} parent=0 // pred_check
    _
  $region31: #{tpu_custom_call.1} parent=0 // pred_check_branch
    %386 = sbr.rel (0) target = $region33
  $region32: #{tpu_custom_call.1} parent=0 // pred_region
    _
  $region33: #{tpu_custom_call.1} parent=0 // pred_fallthru
    _
  // Predicated region
  $region34: #{tpu_custom_call.1} parent=0 // pred_check
    _
  $region35: #{tpu_custom_call.1} parent=0 // pred_check_branch
    %388 = sbr.rel (0) target = $region37
  $region36: #{tpu_custom_call.1} parent=0 // pred_region
    _
  $region37: #{tpu_custom_call.1} parent=0 // pred_fallthru
    _

</llo_original>
